<compile_context>
chip_gen: v7x
topology: tpu7x:2x2x1
jax: 0.10.0
libtpu: 0.0.40
codegen_flags: <defaults>
</compile_context>

<pallas_src>
import jax
import jax.numpy as jnp
from jax.experimental import pallas as pl
from jax.experimental.pallas import tpu as pltpu


# ---------------------------------------------------------------------------
# Kernel: one (TB, tn) output tile, accumulated over the K (feature) grid axis.
# ---------------------------------------------------------------------------
def linear_kernel(x_ref, wt_ref, b_ref, o_ref, acc_ref):
    # x_ref  : (TB, tk)  input-rows tile            (compute dtype: f32 or bf16)
    # wt_ref : (tk, tn)  pre-transposed weight tile (compute dtype)
    # b_ref  : (1,  tn)  bias tile                  (f32)
    # o_ref  : (TB, tn)  output tile                (f32)
    # acc_ref: (TB, tn)  f32 accumulator scratch, resident across the K axis
    k = pl.program_id(2)

    @pl.when(k == 0)
    def _():
        acc_ref[...] = jnp.zeros_like(acc_ref)

    acc_ref[...] += jnp.dot(x_ref[...], wt_ref[...],
                            preferred_element_type=jnp.float32)

    @pl.when(k == pl.num_programs(2) - 1)
    def _():
        # Bias add + store in f32 (no bf16 epilogue ping-pong; safe on v5e).
        o_ref[...] = (acc_ref[...] + b_ref[...]).astype(o_ref.dtype)


# ---------------------------------------------------------------------------
# One-time (init-time) parameter preparation — hoisted out of the hot path.
# ---------------------------------------------------------------------------
def prepare_classifier_params(w, b, compute_dtype=jnp.float32):
    """Transpose W once to (F, C), pad C to a multiple of 128 lanes only when
    C >= 128, and cast the weight to the compute dtype (bf16 recommended on
    v6e/v7x).  Bias stays f32.  Returns (wt, b2) ready for classifier_forward."""
    C, F = w.shape
    if C >= 128 and C % 128 != 0:
        C_pad = pl.cdiv(C, 128) * 128          # lane-dense stores for big heads
    else:
        C_pad = C                              # tiny heads: masked stores win
    wt = w.T                                   # one-time transpose: (F, C)
    if C_pad != C:
        wt = jnp.pad(wt, ((0, 0), (0, C_pad - C)))
        b = jnp.pad(b, (0, C_pad - C))
    wt = wt.astype(compute_dtype)
    b2 = b.reshape(1, C_pad).astype(jnp.float32)
    return wt, b2


def _pick_tile(dim, cap):
    """Largest tile <= cap: the full dim if it fits, else the biggest
    power-of-two divisor of `dim` (so the axis is never ragged)."""
    if dim <= cap:
        return dim
    c = cap
    while c >= 128:
        if dim % c == 0:
            return c
        c //= 2
    # TODO(synk): for huge dims with no 128-aligned divisor, pad F/C at init.
    return dim


def _spec(shape, index_map, single_buffer):
    if single_buffer:
        # Constant-index block: never needs a second pipeline buffer.
        return pl.BlockSpec(shape, index_map, pipeline_mode=pl.Buffered(1))
    return pl.BlockSpec(shape, index_map)


# ---------------------------------------------------------------------------
# Forward: y = x @ W.T + b   (wt, b2 come from prepare_classifier_params)
# ---------------------------------------------------------------------------
def classifier_forward(x, wt, b2, num_classes, *,
                       tb_cap=256, tk_cap=1024, tn_cap=512):
    B, F = x.shape
    F_w, C_pad = wt.shape
    assert F_w == F, "feature dims of x and prepared weight must match"

    # Match the compute dtype chosen at prepare time (bf16 fast path).
    if x.dtype != wt.dtype:
        x = x.astype(wt.dtype)

    in_size = x.dtype.itemsize
    out_dtype = jnp.float32
    out_size = 4

    # bf16 packs 2 rows per sublane -> minimum batch tile of 16 (f32: 8).
    sub = 16 if in_size == 2 else 8
    tb_cap = max(sub, (tb_cap // sub) * sub)

    # Batch tile: full-dim block when B fits (always legal, no padding);
    # otherwise a fixed tile with the ragged final block masked on store.
    TB = B if B <= tb_cap else tb_cap
    tk = _pick_tile(F, tk_cap)        # never ragged: divides F or equals F
    tn = _pick_tile(C_pad, tn_cap)    # never ragged: divides C_pad or equals it

    nb = pl.cdiv(B, TB)
    nn = C_pad // tn
    nk = F // tk

    w_resident = (nn == 1 and nk == 1)   # weight index_map constant over grid
    b_resident = (nn == 1)               # bias index_map constant over grid

    # --- VMEM budget (explicit, per perf review) ---------------------------
    w_bufs = 1 if w_resident else 2
    b_bufs = 1 if b_resident else 2
    vmem_est = (2 * TB * tk * in_size        # x tiles (double-buffered)
                + w_bufs * tk * tn * in_size  # weight tiles
                + b_bufs * tn * 4             # bias
                + 2 * TB * tn * out_size      # output tiles
                + TB * tn * 4)                # accumulator scratch
    # >= v5e's 16 MiB scoped default when needed, well under v7x's 64 MiB phys.
    vmem_limit = int(min(48 * 1024 * 1024, max(16 * 1024 * 1024, 4 * vmem_est)))

    cost = pl.CostEstimate(
        flops=2 * B * F * C_pad + B * C_pad,
        bytes_accessed=(B * F * in_size + F * C_pad * in_size
                        + C_pad * 4 + B * C_pad * out_size),
        transcendentals=0,
    )

    out = pl.pallas_call(
        linear_kernel,
        out_shape=jax.ShapeDtypeStruct((B, C_pad), out_dtype),
        grid_spec=pltpu.PrefetchScalarGridSpec(
            num_scalar_prefetch=0,
            grid=(nb, nn, nk),                                   # K last
            in_specs=[
                pl.BlockSpec((TB, tk), lambda i, j, k: (i, k)),  # x tile
                _spec((tk, tn), lambda i, j, k: (k, j), w_resident),  # weight
                _spec((1, tn), lambda i, j, k: (0, j), b_resident),   # bias
            ],
            out_specs=pl.BlockSpec((TB, tn), lambda i, j, k: (i, j)),
            scratch_shapes=[pltpu.VMEM((TB, tn), jnp.float32)],
        ),
        compiler_params=pltpu.CompilerParams(
            # batch/class axes shard across v7x's 2 TCs; K is the reduction.
            dimension_semantics=("parallel", "parallel", "arbitrary"),
            vmem_limit_bytes=vmem_limit,
        ),
        cost_estimate=cost,
    )(x, wt, b2)

    return out if C_pad == num_classes else out[:, :num_classes]


if __name__ == "__main__":
    # --- Case 1: toy shapes implied by the module (f32 exact path) ----------
    batch, num_features, num_classes = 8, 32, 16
    kx, kw, kb = jax.random.split(jax.random.PRNGKey(0), 3)
    x = jax.random.normal(kx, (batch, num_features), dtype=jnp.float32)
    bound = num_features ** -0.5      # mimic nn.Linear's uniform init range
    w = jax.random.uniform(kw, (num_classes, num_features),
                           minval=-bound, maxval=bound, dtype=jnp.float32)
    b = jax.random.uniform(kb, (num_classes,),
                           minval=-bound, maxval=bound, dtype=jnp.float32)

    wt, bb = prepare_classifier_params(w, b, compute_dtype=jnp.float32)  # once
    y = jax.block_until_ready(classifier_forward(x, wt, bb, num_classes))
    y_ref = x @ w.T + b
    assert y.shape == (batch, num_classes)
    assert jnp.allclose(y, y_ref, atol=1e-5, rtol=1e-5)

    # --- Case 2: exercise the tiled path (K/N grid + accumulator, ragged
    #             batch, padded classes) and the bf16 fast path --------------
    batch2, feat2, cls2 = 72, 640, 200
    k2x, k2w, k2b = jax.random.split(jax.random.PRNGKey(1), 3)
    x2 = jax.random.normal(k2x, (batch2, feat2), dtype=jnp.float32)
    bound2 = feat2 ** -0.5
    w2 = jax.random.uniform(k2w, (cls2, feat2),
                            minval=-bound2, maxval=bound2, dtype=jnp.float32)
    b2 = jax.random.uniform(k2b, (cls2,),
                            minval=-bound2, maxval=bound2, dtype=jnp.float32)
    y2_ref = x2 @ w2.T + b2

    # f32 with small tile caps to force nb=3 (ragged), nn=2, nk=5.
    wt2, bb2 = prepare_classifier_params(w2, b2, compute_dtype=jnp.float32)
    y2 = jax.block_until_ready(
        classifier_forward(x2, wt2, bb2, cls2, tb_cap=32, tk_cap=128, tn_cap=128))
    assert y2.shape == (batch2, cls2)
    assert jnp.allclose(y2, y2_ref, atol=1e-4, rtol=1e-4)

    # bf16 fast path (recommended default on v6e/v7x): bf16 operands,
    # f32 accumulation and f32 bias add / output.
    wt2_bf, bb2_bf = prepare_classifier_params(w2, b2, compute_dtype=jnp.bfloat16)
    y2_bf = jax.block_until_ready(classifier_forward(x2, wt2_bf, bb2_bf, cls2))
    assert y2_bf.shape == (batch2, cls2)
    assert jnp.allclose(y2_bf, y2_ref, atol=5e-2, rtol=5e-2)

    print("KERNEL_OK")
</pallas_src>

<mosaic_0001>
module attributes {stable_mosaic.version = 11 : i64} {
  func.func @linear_kernel(%arg0: i32, %arg1: i32, %arg2: i32, %arg3: memref<8x32xf32, #tpu.memory_space<vmem>>, %arg4: memref<32x16xf32, #tpu.memory_space<vmem>>, %arg5: memref<1x16xf32, #tpu.memory_space<vmem>>, %arg6: memref<8x16xf32, #tpu.memory_space<vmem>>, %arg7: memref<8x16xf32, #tpu.memory_space<vmem>>) attributes {dimension_semantics = [#tpu.dimension_semantics<parallel>, #tpu.dimension_semantics<parallel>, #tpu.dimension_semantics<arbitrary>], iteration_bounds = array<i64: 1, 1, 1>, scalar_prefetch = 0 : i64, scratch_operands = 1 : i64, tpu.core_type = #tpu.core_type<tc>, window_params = [{transform_indices = @transform_0, window_bounds = array<i64: 8, 32>}, {pipeline_mode = #tpu.pipeline_mode<synchronous>, transform_indices = @transform_1, window_bounds = array<i64: 32, 16>}, {pipeline_mode = #tpu.pipeline_mode<synchronous>, transform_indices = @transform_2, window_bounds = array<i64: 1, 16>}, {transform_indices = @transform_3, window_bounds = array<i64: 8, 16>}]} {
    %c0_i32 = arith.constant 0 : i32
    %0 = arith.cmpi eq, %arg2, %c0_i32 : i32
    %1 = arith.extui %0 : i1 to i32
    %c0_i32_0 = arith.constant 0 : i32
    %2 = arith.cmpi ne, %1, %c0_i32_0 : i32
    scf.if %2 {
      %cst_10 = arith.constant 0.000000e+00 : f32
      %12 = vector.broadcast %cst_10 : f32 to vector<8x16xf32>
      %c0_11 = arith.constant 0 : index
      %c0_12 = arith.constant 0 : index
      %13 = vector.load %arg7[%c0_11, %c0_12] : memref<8x16xf32, #tpu.memory_space<vmem>>, vector<8x16xf32>
      tpu.vector_store %arg7[%c0_11, %c0_12], %12 {strides = array<i32>} : memref<8x16xf32, #tpu.memory_space<vmem>>, vector<8x16xf32>,
    } else {
    }
    %c0 = arith.constant 0 : index
    %c0_1 = arith.constant 0 : index
    %3 = vector.load %arg7[%c0, %c0_1] : memref<8x16xf32, #tpu.memory_space<vmem>>, vector<8x16xf32>
    %c0_2 = arith.constant 0 : index
    %c0_3 = arith.constant 0 : index
    %4 = vector.load %arg3[%c0_2, %c0_3] : memref<8x32xf32, #tpu.memory_space<vmem>>, vector<8x32xf32>
    %c0_4 = arith.constant 0 : index
    %c0_5 = arith.constant 0 : index
    %5 = vector.load %arg4[%c0_4, %c0_5] : memref<32x16xf32, #tpu.memory_space<vmem>>, vector<32x16xf32>
    %cst = arith.constant dense<0.000000e+00> : vector<8x16xf32>
    %6 = tpu.matmul %4, %5, %cst {dimension_numbers = #tpu.dot_dimension_numbers<[1], [0], [0], [1], [0, 0, 1, 1], [], []>} : vector<8x32xf32>, vector<32x16xf32>, vector<8x16xf32> -> vector<8x16xf32>
    %7 = arith.addf %3, %6 : vector<8x16xf32>
    %c0_6 = arith.constant 0 : index
    %c0_7 = arith.constant 0 : index
    %8 = vector.load %arg7[%c0_6, %c0_7] : memref<8x16xf32, #tpu.memory_space<vmem>>, vector<8x16xf32>
    tpu.vector_store %arg7[%c0_6, %c0_7], %7 {strides = array<i32>} : memref<8x16xf32, #tpu.memory_space<vmem>>, vector<8x16xf32>,
    %c0_i32_8 = arith.constant 0 : i32
    %9 = arith.cmpi eq, %arg2, %c0_i32_8 : i32
    %10 = arith.extui %9 : i1 to i32
    %c0_i32_9 = arith.constant 0 : i32
    %11 = arith.cmpi ne, %10, %c0_i32_9 : i32
    scf.if %11 {
      %c0_10 = arith.constant 0 : index
      %c0_11 = arith.constant 0 : index
      %12 = vector.load %arg7[%c0_10, %c0_11] : memref<8x16xf32, #tpu.memory_space<vmem>>, vector<8x16xf32>
      %c0_12 = arith.constant 0 : index
      %c0_13 = arith.constant 0 : index
      %13 = vector.load %arg5[%c0_12, %c0_13] : memref<1x16xf32, #tpu.memory_space<vmem>>, vector<1x16xf32>
      %14 = vector.broadcast %13 : vector<1x16xf32> to vector<8x16xf32>
      %15 = arith.addf %12, %14 : vector<8x16xf32>
      %c0_14 = arith.constant 0 : index
      %c0_15 = arith.constant 0 : index
      %16 = vector.load %arg6[%c0_14, %c0_15] : memref<8x16xf32, #tpu.memory_space<vmem>>, vector<8x16xf32>
      tpu.vector_store %arg6[%c0_14, %c0_15], %15 {strides = array<i32>} : memref<8x16xf32, #tpu.memory_space<vmem>>, vector<8x16xf32>,
    } else {
    }
    return
  }
  func.func @transform_0(%arg0: i32, %arg1: i32, %arg2: i32) -> (i32, i32) {
    %c0_i32 = arith.constant 0 : i32
    return %arg0, %arg2 : i32, i32
  }
  func.func @transform_1(%arg0: i32, %arg1: i32, %arg2: i32) -> (i32, i32) {
    %c0_i32 = arith.constant 0 : i32
    return %arg2, %arg1 : i32, i32
  }
  func.func @transform_2(%arg0: i32, %arg1: i32, %arg2: i32) -> (i32, i32) {
    %c0_i32 = arith.constant 0 : i32
    %c0_i32_0 = arith.constant 0 : i32
    return %c0_i32, %arg1 : i32, i32
  }
  func.func @transform_3(%arg0: i32, %arg1: i32, %arg2: i32) -> (i32, i32) {
    %c0_i32 = arith.constant 0 : i32
    return %arg0, %arg1 : i32, i32
  }
}

</mosaic_0001>

<llo_original>
// kernel: tpu_custom_call.1
$region0: #{tpu_custom_call.1}
  #allocation0 [shape = 'u32[]', space=smem, size = 0x4, offset = 0x4, fixed_abs, tag = 'smem constant byte address 0x4 - core index']
  #allocation1 [shape = 'u32[144,128]{1,0:T(1,128)}', space=vmem, size = 0x12000, scoped, tag = 'internal scratch']
  #allocation2 [shape = 'f32[8,16]{1,0:T(8,128)}', space=vmem, size = 0x1000, scoped, tag = 'scratch operand']
  %s0 = inlined_call_operand.vmem [shape: f32[8,32], index: 0, kind: input, shape index: {}]
  %s1 = inlined_call_operand.vmem [shape: f32[32,16], index: 1, kind: input, shape index: {}]
  %s2 = inlined_call_operand.vmem [shape: f32[1,16], index: 2, kind: input, shape index: {}]
  %s3 = inlined_call_operand.hbm [shape: f32[8,16], index: 3, kind: output, shape index: {}]
  %s4 = sld [smem:[#allocation0]]
  $region30: #{tpu_custom_call.1} parent=0
    _
  %s6 = ssub.s32 1, %s4
  %s7 = scalar_select 0, %s6, %s4
  $region1: #{tpu_custom_call.1} parent=0
    #allocation3 [shape = 'u8[4096]{0}', space=vmem, size = 0x1000, scoped, tag = 'output window, operand 0, single buffered']
    #allocation4 [shape = 's32[1]{0}', space=sflag, size = 0x4, scoped, tag = 'scoped memory for tpu_custom_call.1']
    %8 = vsyncpa [#allocation4], 0
    // Predicated region
    $region2: #{tpu_custom_call.1} parent=1 // pred_check
      _
    $region3: #{tpu_custom_call.1} parent=1 // pred_check_branch
      %10 = sbr.rel (0) target = $region5
    $region4: #{tpu_custom_call.1} parent=1 // pred_region
      _
    $region5: #{tpu_custom_call.1} parent=1 // pred_fallthru
      _
    // Predicated region
    $region6: #{tpu_custom_call.1} parent=1 // pred_check
      _
    $region7: #{tpu_custom_call.1} parent=1 // pred_check_branch
      %12 = sbr.rel (0) target = $region9
    $region8: #{tpu_custom_call.1} parent=1 // pred_region
      _
    $region9: #{tpu_custom_call.1} parent=1 // pred_fallthru
      _
    // Predicated region
    $region10: #{tpu_custom_call.1} parent=1 // pred_check
      _
    $region11: #{tpu_custom_call.1} parent=1 // pred_check_branch
      %14 = sbr.rel (0) target = $region13
    $region12: #{tpu_custom_call.1} parent=1 // pred_region
      _
    $region13: #{tpu_custom_call.1} parent=1 // pred_fallthru
      _
    %p15 = scmp.eq.s32.totalorder 0, 0
    // Predicated region
    $region14: #{tpu_custom_call.1} parent=1 // pred_check
      %p16 = pneg %p15
    $region15: #{tpu_custom_call.1} parent=1 // pred_check_branch
      %18 = sbr.rel (%p16) target = $region17
    $region16: #{tpu_custom_call.1} parent=1 // pred_region
      %vm19 = vcmask 130048
      %20 = vst.msk [vmem:[#allocation2] sm:$0xff] %vm19, 0.0
    $region17: #{tpu_custom_call.1} parent=1 // pred_fallthru
      _
    %v21 = vld [vmem:[#allocation2] sm:$0xff]
    %v22 = vld [vmem:[%s0] sm:$0xff]
    %v23 = vld [vmem:[%s1] sm:$0xff]
    %v24 = vld [vmem:[%s1 + $0x8] sm:$0xff]
    %v25 = vld [vmem:[%s1 + $0x10] sm:$0xff]
    %v26 = vld [vmem:[%s1 + $0x18] sm:$0xff]
    %vm27 = vcmask 261120
    %v29 = vsel %vm27, %v22, 0
    %31 = vmatprep.subr.mxu0 0.0
    %32 = vmatpush1.msra.mxu0 %v23
    %33 = vmatprep.subr.mxu0 0.0
    %34 = vmatpush1.msra.mxu0 %v24
    %35 = vmatprep.subr.mxu0 0.0
    %36 = vmatpush1.msra.mxu0 %v25
    %37 = vmatprep.subr.mxu0 0.0
    %38 = vmatpush1.msra.mxu0 %v26
    %39 = vmatprep.subr.mxu0 0.0
    %40 = vmatpush1.msra.mxu0 0.0
    %41 = vmatprep.subr.mxu0 0.0
    %42 = vmatpush1.msra.mxu0 0.0
    %43 = vmatprep.subr.mxu0 0.0
    %44 = vmatpush1.msra.mxu0 0.0
    %45 = vmatprep.subr.mxu0 0.0
    %46 = vmatpush1.msra.mxu0 0.0
    %47 = vmatprep.subr.mxu0 0.0
    %48 = vmatpush1.msra.mxu0 0.0
    %49 = vmatprep.subr.mxu0 0.0
    %50 = vmatpush1.msra.mxu0 0.0
    %51 = vmatprep.subr.mxu0 0.0
    %52 = vmatpush1.msra.mxu0 0.0
    %53 = vmatprep.subr.mxu0 0.0
    %54 = vmatpush1.msra.mxu0 0.0
    %55 = vmatprep.subr.mxu0 0.0
    %56 = vmatpush1.msra.mxu0 0.0
    %57 = vmatprep.subr.mxu0 0.0
    %58 = vmatpush1.msra.mxu0 0.0
    %59 = vmatprep.subr.mxu0 0.0
    %60 = vmatpush1.msra.mxu0 0.0
    %61 = vmatprep.subr.mxu0 0.0
    %62 = vmatpush1.msra.mxu0 0.0
    %63 = vmatprep.subr.mxu0 0.0
    %64 = vmatpush1.msra.mxu0 0.0
    %65 = vmatprep.subr.mxu0 0.0
    %66 = vmatpush1.msra.mxu0 0.0
    %67 = vmatprep.subr.mxu0 0.0
    %68 = vmatpush1.msra.mxu0 0.0
    %69 = vmatprep.subr.mxu0 0.0
    %70 = vmatpush1.msra.mxu0 0.0
    %71 = vmatprep.subr.mxu0 0.0
    %72 = vmatpush1.msra.mxu0 0.0
    %73 = vmatprep.subr.mxu0 0.0
    %74 = vmatpush1.msra.mxu0 0.0
    %75 = vmatprep.subr.mxu0 0.0
    %76 = vmatpush1.msra.mxu0 0.0
    %77 = vmatprep.subr.mxu0 0.0
    %78 = vmatpush1.msra.mxu0 0.0
    %79 = vmatprep.subr.mxu0 0.0
    %80 = vmatpush1.msra.mxu0 0.0
    %81 = vmatprep.subr.mxu0 0.0
    %82 = vmatpush1.msra.mxu0 0.0
    %83 = vmatprep.subr.mxu0 0.0
    %84 = vmatpush1.msra.mxu0 0.0
    %85 = vmatprep.subr.mxu0 0.0
    %86 = vmatpush1.msra.mxu0 0.0
    %87 = vmatprep.subr.mxu0 0.0
    %88 = vmatpush1.msra.mxu0 0.0
    %89 = vmatprep.subr.mxu0 0.0
    %90 = vmatpush1.msra.mxu0 0.0
    %91 = vmatprep.subr.mxu0 0.0
    %92 = vmatpush1.msra.mxu0 0.0
    %93 = vmatprep.subr.mxu0 0.0
    %94 = vmatpush1.msra.mxu0 0.0
    %95 = vmatprep.mubr.f32.mxu0 0.0
    %96 = vmatmul.mubr.f32.gmra.mrb[0].mxu0 %v29
    %v97 = vpop.f32.mrb[0].mxu0
    %v98 = vadd.f32 0.0, %v97
    %v99 = vpop.f32.mrb[0].mxu0
    %100 = vdwg.mxu0
    %v101 = vadd.f32 %v21, %v98
    %vm102 = vcmask 130048
    %103 = vst.msk [vmem:[#allocation2] sm:$0xff] %vm102, %v101
    // Predicated region
    $region18: #{tpu_custom_call.1} parent=1 // pred_check
      %p104 = pneg %p15
    $region19: #{tpu_custom_call.1} parent=1 // pred_check_branch
      %106 = sbr.rel (%p104) target = $region21
    $region20: #{tpu_custom_call.1} parent=1 // pred_region
      %v107 = vld [vmem:[#allocation2] sm:$0xff]
      %v108 = vld [vmem:[%s2] sm:$0x1]
      %v110 = vlaneseq
      %v111 = vshrl.u32 %v110, 7
      %v112 = vsub.s32 0, %v111
      %v113 = vrot.slane %v108, %v112
      %v115 = vadd.f32 %v107, %v113
      %116 = vst.msk [vmem:[#allocation3] sm:$0xff] %vm102, %v115
    $region21: #{tpu_custom_call.1} parent=1 // pred_fallthru
      _
    // Predicated region
    $region22: #{tpu_custom_call.1} parent=1 // pred_check
      _
    $region23: #{tpu_custom_call.1} parent=1 // pred_check_branch
      %118 = sbr.rel (0) target = $region25
    $region24: #{tpu_custom_call.1} parent=1 // pred_region
      %s120 = ssub.s32 128, 128
      %121 = vsyncadd [#allocation4], %s120
      %s123 = sshll.u32 [#allocation3], 4
      %s124 = int_to_ptr.vmem [resolvable:$true] %s123
      %126 = dma.vmem_to_hbm [thread:$0]  %s124, 128, %s3, [#allocation4]
    $region25: #{tpu_custom_call.1} parent=1 // pred_fallthru
      _
    // Predicated region
    $region26: #{tpu_custom_call.1} parent=1 // pred_check
      _
    $region27: #{tpu_custom_call.1} parent=1 // pred_check_branch
      %128 = sbr.rel (0) target = $region29
    $region28: #{tpu_custom_call.1} parent=1 // pred_region
      %129 = dma.done [#allocation4], 128
    $region29: #{tpu_custom_call.1} parent=1 // pred_fallthru
      _
    %130 = vsyncpa [#allocation4], 1

</llo_original>
